<compile_context>
chip_gen: v7x
topology: tpu7x:2x2x1
jax: 0.10.0
libtpu: 0.0.40
codegen_flags: <defaults>
</compile_context>

<pallas_src>
import functools

import jax
import jax.numpy as jnp
from jax.experimental import pallas as pl
from jax.experimental.pallas import tpu as pltpu

NUM_CLASSES = 6
_LANE = 128
_SUBLANE = 8
_NCORE_SPLITS = 2            # v7x megacore split; harmless serial loop on v5e/v6e
_TGT_BLOCK_BYTES = 1 << 20   # ~1 MiB label block per grid step
_ACC_BYTES_CAP = 2 << 20     # int32 bitmask accumulator stays <= 2 MiB


def _round_up(x, m):
    return ((x + m - 1) // m) * m


def _presence_bits_kernel(tgt_ref, pres_ref, acc_ref, *, num_classes,
                          check_negative):
    """Accumulate a per-lane class bitmask; decode to (B, C) presence at the end.

    tgt_ref : (B, TILE_R, 128) integer labels (pipelined, native dtype)
    pres_ref: (B, C) f32 partial class-presence output for this core-split
    acc_ref : (B, TILE_R, 128) int32 running bitmask accumulator (VMEM scratch)
    """
    k = pl.program_id(1)

    @pl.when(k == 0)
    def _init():
        acc_ref[...] = jnp.zeros_like(acc_ref)

    tgt = tgt_ref[...].astype(jnp.int32)
    valid = tgt < num_classes
    if check_negative:  # signed label dtype: also drop negatives (e.g. -1 ignore)
        valid = jnp.logical_and(valid, tgt >= 0)
    # Guarded shift: amount is masked to [0, 31] and out-of-range labels are
    # selected away, so ignore labels can never fabricate class presence.
    bits = jnp.where(valid, jnp.left_shift(jnp.int32(1), tgt & 31), jnp.int32(0))
    acc_ref[...] = acc_ref[...] | bits

    @pl.when(k == pl.num_programs(1) - 1)
    def _finalize():
        acc = acc_ref[...]                              # (B, TILE_R, 128) int32
        B = acc.shape[0]
        cls_iota = jax.lax.broadcasted_iota(jnp.int32, (1, num_classes), 1)
        pres = jnp.zeros((B, num_classes), jnp.float32)
        for c in range(num_classes):   # small static C, runs once per split
            hit = (acc >> c) & 1
            col = jnp.max(jnp.max(hit, axis=2), axis=1, keepdims=True)  # (B, 1)
            onehot = (cls_iota == c).astype(jnp.float32)                # (1, C)
            pres = jnp.maximum(pres, col.astype(jnp.float32) * onehot)
        pres_ref[...] = pres


def _class_presence(target, num_classes, tgt_block_bytes=_TGT_BLOCK_BYTES):
    """target: (B, ...) integer labels -> (B, num_classes) f32 presence."""
    assert jnp.issubdtype(target.dtype, jnp.integer)
    B = target.shape[0]
    tgt = target.reshape(B, -1)                 # keep native integer dtype
    HW = tgt.shape[1]
    itemsize = jnp.dtype(target.dtype).itemsize

    # Lane-dense layout: (B, rows, 128).
    rows = pl.cdiv(HW, _LANE)

    # Tile the row axis: ~1 MiB label blocks, int32 accumulator <= 2 MiB.
    tile_r_cap = max(_SUBLANE,
                     min(tgt_block_bytes // (B * _LANE * itemsize),
                         _ACC_BYTES_CAP // (B * _LANE * 4)))
    tile_r_cap = max(_SUBLANE, (tile_r_cap // _SUBLANE) * _SUBLANE)

    rows_per_split = pl.cdiv(rows, _NCORE_SPLITS)
    tile_r = min(tile_r_cap, _round_up(rows_per_split, _SUBLANE))
    tiles_per_split = pl.cdiv(rows_per_split, tile_r)
    rows_padded = _NCORE_SPLITS * tiles_per_split * tile_r
    hw_padded = rows_padded * _LANE

    if hw_padded != HW:
        # Out-of-range fill label -> dropped exactly like torch.histc.
        tgt = jnp.pad(tgt, ((0, 0), (0, hw_padded - HW)),
                      constant_values=num_classes)
    tgt3 = tgt.reshape(B, rows_padded, _LANE)

    kernel = functools.partial(
        _presence_bits_kernel,
        num_classes=num_classes,
        check_negative=not jnp.issubdtype(target.dtype, jnp.unsignedinteger),
    )

    grid_spec = pltpu.PrefetchScalarGridSpec(
        num_scalar_prefetch=0,
        grid=(_NCORE_SPLITS, tiles_per_split),
        in_specs=[
            pl.BlockSpec((B, tile_r, _LANE),
                         lambda p, k: (0, p * tiles_per_split + k, 0)),
        ],
        # Leading split dim squeezed out: kernel sees a (B, C) output block.
        out_specs=pl.BlockSpec((None, B, num_classes), lambda p, k: (p, 0, 0)),
        scratch_shapes=[pltpu.VMEM((B, tile_r, _LANE), jnp.int32)],
    )

    partial_presence = pl.pallas_call(
        kernel,
        out_shape=jax.ShapeDtypeStruct((_NCORE_SPLITS, B, num_classes),
                                       jnp.float32),
        grid_spec=grid_spec,
        compiler_params=pltpu.CompilerParams(
            dimension_semantics=("parallel", "arbitrary"),
        ),
    )(tgt3)

    # Combine the per-core partial presences (tiny: NCORES x B x C).
    return jnp.max(partial_presence, axis=0)


def se_loss(pred, target, num_classes=NUM_CLASSES,
            tgt_block_bytes=_TGT_BLOCK_BYTES):
    """pred: (B, num_classes) float logits; target: (B, H, W) integer labels."""
    B = pred.shape[0]
    assert pred.shape == (B, num_classes)
    presence = _class_presence(target, num_classes, tgt_block_bytes)
    # Tiny (B, C) BCE epilogue in plain JAX (per the review: B*C elements only).
    p = jax.nn.sigmoid(pred.astype(jnp.float32))
    log_p = jnp.maximum(jnp.log(p), -100.0)        # nn.BCELoss clamps log at -100
    log_1mp = jnp.maximum(jnp.log1p(-p), -100.0)
    return jnp.mean(-(presence * log_p + (1.0 - presence) * log_1mp))


def se_loss_ref(pred, target, num_classes=NUM_CLASSES):
    """Pure-JAX reference for correctness checking."""
    B = pred.shape[0]
    t = target.reshape(B, -1).astype(jnp.int32)
    presence = jnp.stack(
        [jnp.any(t == c, axis=1) for c in range(num_classes)], axis=1
    ).astype(jnp.float32)
    p = jax.nn.sigmoid(pred.astype(jnp.float32))
    log_p = jnp.maximum(jnp.log(p), -100.0)
    log_1mp = jnp.maximum(jnp.log1p(-p), -100.0)
    return jnp.mean(-(presence * log_p + (1.0 - presence) * log_1mp))


if __name__ == "__main__":
    key = jax.random.PRNGKey(0)
    keys = jax.random.split(key, 8)

    # Case 1: small int32 map, single tile per split; includes ignore=255.
    B, C, H, W = 2, NUM_CLASSES, 16, 16
    pred1 = jax.random.normal(keys[0], (B, C), dtype=jnp.float32)
    tgt1 = jax.random.randint(keys[1], (B, H, W), 0, C, dtype=jnp.int32)
    tgt1 = jnp.where(jax.random.bernoulli(keys[2], 0.1, (B, H, W)),
                     jnp.int32(255), tgt1)
    loss1 = jax.block_until_ready(se_loss(pred1, tgt1))
    ref1 = se_loss_ref(pred1, tgt1)
    assert jnp.allclose(loss1, ref1, atol=1e-5, rtol=1e-5), (loss1, ref1)

    # Case 2: tiny block size -> multiple tiles per split, row padding, and
    # presence accumulation across the "arbitrary" axis.
    B2, H2, W2 = 2, 50, 50
    pred2 = jax.random.normal(keys[3], (B2, C), dtype=jnp.float32)
    tgt2 = jax.random.randint(keys[4], (B2, H2, W2), 0, C, dtype=jnp.int32)
    loss2 = jax.block_until_ready(se_loss(pred2, tgt2, tgt_block_bytes=8192))
    ref2 = se_loss_ref(pred2, tgt2)
    assert jnp.allclose(loss2, ref2, atol=1e-5, rtol=1e-5), (loss2, ref2)

    # Case 3: uint8 labels (lane-dense packed dtype path), some classes absent,
    # ignore=255 dropped; exercises the unsigned (no negative-check) branch.
    B3, H3, W3 = 2, 32, 32
    pred3 = jax.random.normal(keys[5], (B3, C), dtype=jnp.float32)
    tgt3 = jax.random.randint(keys[6], (B3, H3, W3), 0, 4,
                              dtype=jnp.int32).astype(jnp.uint8)
    tgt3 = jnp.where(jax.random.bernoulli(keys[7], 0.1, (B3, H3, W3)),
                     jnp.uint8(255), tgt3)
    loss3 = jax.block_until_ready(se_loss(pred3, tgt3))
    ref3 = se_loss_ref(pred3, tgt3)
    assert jnp.allclose(loss3, ref3, atol=1e-5, rtol=1e-5), (loss3, ref3)

    print("KERNEL_OK")
</pallas_src>

<mosaic_0001>
module attributes {stable_mosaic.version = 11 : i64} {
  func.func @_presence_bits_kernel(%arg0: i32, %arg1: i32, %arg2: memref<2x8x128xi32, #tpu.memory_space<vmem>>, %arg3: memref<1x2x6xf32, #tpu.memory_space<vmem>>, %arg4: memref<2x8x128xi32, #tpu.memory_space<vmem>>) attributes {dimension_semantics = [#tpu.dimension_semantics<parallel>, #tpu.dimension_semantics<arbitrary>], iteration_bounds = array<i64: 2, 1>, scalar_prefetch = 0 : i64, scratch_operands = 1 : i64, tpu.core_type = #tpu.core_type<tc>, window_params = [{transform_indices = @transform_0, window_bounds = array<i64: 2, 8, 128>}, {transform_indices = @transform_1, window_bounds = array<i64: 1, 2, 6>}]} {
    %c0_i32 = arith.constant 0 : i32
    %0 = arith.cmpi eq, %arg1, %c0_i32 : i32
    %1 = arith.extui %0 : i1 to i32
    %c0_i32_0 = arith.constant 0 : i32
    %2 = arith.cmpi ne, %1, %c0_i32_0 : i32
    scf.if %2 {
      %c0_i32_13 = arith.constant 0 : i32
      %21 = vector.broadcast %c0_i32_13 : i32 to vector<2x8x128xi32>
      %c0_14 = arith.constant 0 : index
      %c0_15 = arith.constant 0 : index
      %c0_16 = arith.constant 0 : index
      %22 = vector.load %arg4[%c0_14, %c0_15, %c0_16] : memref<2x8x128xi32, #tpu.memory_space<vmem>>, vector<2x8x128xi32>
      tpu.vector_store %arg4[%c0_14, %c0_15, %c0_16], %21 {strides = array<i32>} : memref<2x8x128xi32, #tpu.memory_space<vmem>>, vector<2x8x128xi32>,
    } else {
    }
    %c0 = arith.constant 0 : index
    %c0_1 = arith.constant 0 : index
    %c0_2 = arith.constant 0 : index
    %3 = vector.load %arg2[%c0, %c0_1, %c0_2] : memref<2x8x128xi32, #tpu.memory_space<vmem>>, vector<2x8x128xi32>
    %c6_i32 = arith.constant 6 : i32
    %4 = vector.broadcast %c6_i32 : i32 to vector<2x8x128xi32>
    %5 = arith.cmpi slt, %3, %4 : vector<2x8x128xi32>
    %c0_i32_3 = arith.constant 0 : i32
    %6 = vector.broadcast %c0_i32_3 : i32 to vector<2x8x128xi32>
    %7 = arith.cmpi sge, %3, %6 : vector<2x8x128xi32>
    %8 = arith.andi %5, %7 : vector<2x8x128xi1>
    %c31_i32 = arith.constant 31 : i32
    %9 = vector.broadcast %c31_i32 : i32 to vector<2x8x128xi32>
    %10 = arith.andi %3, %9 : vector<2x8x128xi32>
    %c1_i32 = arith.constant 1 : i32
    %11 = vector.broadcast %c1_i32 : i32 to vector<2x8x128xi32>
    %12 = arith.shli %11, %10 : vector<2x8x128xi32>
    %c0_i32_4 = arith.constant 0 : i32
    %13 = vector.broadcast %c0_i32_4 : i32 to vector<2x8x128xi32>
    %14 = arith.select %8, %12, %13 : vector<2x8x128xi1>, vector<2x8x128xi32>
    %c0_5 = arith.constant 0 : index
    %c0_6 = arith.constant 0 : index
    %c0_7 = arith.constant 0 : index
    %15 = vector.load %arg4[%c0_5, %c0_6, %c0_7] : memref<2x8x128xi32, #tpu.memory_space<vmem>>, vector<2x8x128xi32>
    %16 = arith.ori %15, %14 : vector<2x8x128xi32>
    %c0_8 = arith.constant 0 : index
    %c0_9 = arith.constant 0 : index
    %c0_10 = arith.constant 0 : index
    %17 = vector.load %arg4[%c0_8, %c0_9, %c0_10] : memref<2x8x128xi32, #tpu.memory_space<vmem>>, vector<2x8x128xi32>
    tpu.vector_store %arg4[%c0_8, %c0_9, %c0_10], %16 {strides = array<i32>} : memref<2x8x128xi32, #tpu.memory_space<vmem>>, vector<2x8x128xi32>,
    %c0_i32_11 = arith.constant 0 : i32
    %18 = arith.cmpi eq, %arg1, %c0_i32_11 : i32
    %19 = arith.extui %18 : i1 to i32
    %c0_i32_12 = arith.constant 0 : i32
    %20 = arith.cmpi ne, %19, %c0_i32_12 : i32
    scf.if %20 {
      %c0_13 = arith.constant 0 : index
      %c0_14 = arith.constant 0 : index
      %c0_15 = arith.constant 0 : index
      %21 = vector.load %arg4[%c0_13, %c0_14, %c0_15] : memref<2x8x128xi32, #tpu.memory_space<vmem>>, vector<2x8x128xi32>
      %22 = tpu.iota {dimensions = array<i32: 1>} : vector<1x6xi32>
      %cst = arith.constant 0.000000e+00 : f32
      %23 = vector.broadcast %cst : f32 to vector<2x6xf32>
      %c0_i32_16 = arith.constant 0 : i32
      %24 = vector.broadcast %c0_i32_16 : i32 to vector<2x8x128xi32>
      %25 = arith.shrsi %21, %24 : vector<2x8x128xi32>
      %c1_i32_17 = arith.constant 1 : i32
      %26 = vector.broadcast %c1_i32_17 : i32 to vector<2x8x128xi32>
      %27 = arith.andi %25, %26 : vector<2x8x128xi32>
      %cst_18 = arith.constant dense<-2147483648> : vector<2x8xi32>
      %28 = vector.multi_reduction <maxsi>, %27, %cst_18 [2] : vector<2x8x128xi32> to vector<2x8xi32>
      %cst_19 = arith.constant dense<-2147483648> : vector<2xi32>
      %29 = vector.multi_reduction <maxsi>, %28, %cst_19 [1] : vector<2x8xi32> to vector<2xi32>
      %30 = vector.shape_cast %29 : vector<2xi32> to vector<2x1xi32>
      %c0_i32_20 = arith.constant 0 : i32
      %31 = vector.broadcast %c0_i32_20 : i32 to vector<1x6xi32>
      %32 = arith.cmpi eq, %22, %31 : vector<1x6xi32>
      %33 = arith.extui %32 : vector<1x6xi1> to vector<1x6xi32>
      %34 = arith.sitofp %33 : vector<1x6xi32> to vector<1x6xf32>
      %35 = arith.sitofp %30 : vector<2x1xi32> to vector<2x1xf32>
      %36 = vector.broadcast %35 : vector<2x1xf32> to vector<2x6xf32>
      %37 = vector.broadcast %34 : vector<1x6xf32> to vector<2x6xf32>
      %38 = arith.mulf %36, %37 : vector<2x6xf32>
      %39 = arith.maximumf %23, %38 : vector<2x6xf32>
      %c1_i32_21 = arith.constant 1 : i32
      %40 = vector.broadcast %c1_i32_21 : i32 to vector<2x8x128xi32>
      %41 = arith.shrsi %21, %40 : vector<2x8x128xi32>
      %c1_i32_22 = arith.constant 1 : i32
      %42 = vector.broadcast %c1_i32_22 : i32 to vector<2x8x128xi32>
      %43 = arith.andi %41, %42 : vector<2x8x128xi32>
      %cst_23 = arith.constant dense<-2147483648> : vector<2x8xi32>
      %44 = vector.multi_reduction <maxsi>, %43, %cst_23 [2] : vector<2x8x128xi32> to vector<2x8xi32>
      %cst_24 = arith.constant dense<-2147483648> : vector<2xi32>
      %45 = vector.multi_reduction <maxsi>, %44, %cst_24 [1] : vector<2x8xi32> to vector<2xi32>
      %46 = vector.shape_cast %45 : vector<2xi32> to vector<2x1xi32>
      %c1_i32_25 = arith.constant 1 : i32
      %47 = vector.broadcast %c1_i32_25 : i32 to vector<1x6xi32>
      %48 = arith.cmpi eq, %22, %47 : vector<1x6xi32>
      %49 = arith.extui %48 : vector<1x6xi1> to vector<1x6xi32>
      %50 = arith.sitofp %49 : vector<1x6xi32> to vector<1x6xf32>
      %51 = arith.sitofp %46 : vector<2x1xi32> to vector<2x1xf32>
      %52 = vector.broadcast %51 : vector<2x1xf32> to vector<2x6xf32>
      %53 = vector.broadcast %50 : vector<1x6xf32> to vector<2x6xf32>
      %54 = arith.mulf %52, %53 : vector<2x6xf32>
      %55 = arith.maximumf %39, %54 : vector<2x6xf32>
      %c2_i32 = arith.constant 2 : i32
      %56 = vector.broadcast %c2_i32 : i32 to vector<2x8x128xi32>
      %57 = arith.shrsi %21, %56 : vector<2x8x128xi32>
      %c1_i32_26 = arith.constant 1 : i32
      %58 = vector.broadcast %c1_i32_26 : i32 to vector<2x8x128xi32>
      %59 = arith.andi %57, %58 : vector<2x8x128xi32>
      %cst_27 = arith.constant dense<-2147483648> : vector<2x8xi32>
      %60 = vector.multi_reduction <maxsi>, %59, %cst_27 [2] : vector<2x8x128xi32> to vector<2x8xi32>
      %cst_28 = arith.constant dense<-2147483648> : vector<2xi32>
      %61 = vector.multi_reduction <maxsi>, %60, %cst_28 [1] : vector<2x8xi32> to vector<2xi32>
      %62 = vector.shape_cast %61 : vector<2xi32> to vector<2x1xi32>
      %c2_i32_29 = arith.constant 2 : i32
      %63 = vector.broadcast %c2_i32_29 : i32 to vector<1x6xi32>
      %64 = arith.cmpi eq, %22, %63 : vector<1x6xi32>
      %65 = arith.extui %64 : vector<1x6xi1> to vector<1x6xi32>
      %66 = arith.sitofp %65 : vector<1x6xi32> to vector<1x6xf32>
      %67 = arith.sitofp %62 : vector<2x1xi32> to vector<2x1xf32>
      %68 = vector.broadcast %67 : vector<2x1xf32> to vector<2x6xf32>
      %69 = vector.broadcast %66 : vector<1x6xf32> to vector<2x6xf32>
      %70 = arith.mulf %68, %69 : vector<2x6xf32>
      %71 = arith.maximumf %55, %70 : vector<2x6xf32>
      %c3_i32 = arith.constant 3 : i32
      %72 = vector.broadcast %c3_i32 : i32 to vector<2x8x128xi32>
      %73 = arith.shrsi %21, %72 : vector<2x8x128xi32>
      %c1_i32_30 = arith.constant 1 : i32
      %74 = vector.broadcast %c1_i32_30 : i32 to vector<2x8x128xi32>
      %75 = arith.andi %73, %74 : vector<2x8x128xi32>
      %cst_31 = arith.constant dense<-2147483648> : vector<2x8xi32>
      %76 = vector.multi_reduction <maxsi>, %75, %cst_31 [2] : vector<2x8x128xi32> to vector<2x8xi32>
      %cst_32 = arith.constant dense<-2147483648> : vector<2xi32>
      %77 = vector.multi_reduction <maxsi>, %76, %cst_32 [1] : vector<2x8xi32> to vector<2xi32>
      %78 = vector.shape_cast %77 : vector<2xi32> to vector<2x1xi32>
      %c3_i32_33 = arith.constant 3 : i32
      %79 = vector.broadcast %c3_i32_33 : i32 to vector<1x6xi32>
      %80 = arith.cmpi eq, %22, %79 : vector<1x6xi32>
      %81 = arith.extui %80 : vector<1x6xi1> to vector<1x6xi32>
      %82 = arith.sitofp %81 : vector<1x6xi32> to vector<1x6xf32>
      %83 = arith.sitofp %78 : vector<2x1xi32> to vector<2x1xf32>
      %84 = vector.broadcast %83 : vector<2x1xf32> to vector<2x6xf32>
      %85 = vector.broadcast %82 : vector<1x6xf32> to vector<2x6xf32>
      %86 = arith.mulf %84, %85 : vector<2x6xf32>
      %87 = arith.maximumf %71, %86 : vector<2x6xf32>
      %c4_i32 = arith.constant 4 : i32
      %88 = vector.broadcast %c4_i32 : i32 to vector<2x8x128xi32>
      %89 = arith.shrsi %21, %88 : vector<2x8x128xi32>
      %c1_i32_34 = arith.constant 1 : i32
      %90 = vector.broadcast %c1_i32_34 : i32 to vector<2x8x128xi32>
      %91 = arith.andi %89, %90 : vector<2x8x128xi32>
      %cst_35 = arith.constant dense<-2147483648> : vector<2x8xi32>
      %92 = vector.multi_reduction <maxsi>, %91, %cst_35 [2] : vector<2x8x128xi32> to vector<2x8xi32>
      %cst_36 = arith.constant dense<-2147483648> : vector<2xi32>
      %93 = vector.multi_reduction <maxsi>, %92, %cst_36 [1] : vector<2x8xi32> to vector<2xi32>
      %94 = vector.shape_cast %93 : vector<2xi32> to vector<2x1xi32>
      %c4_i32_37 = arith.constant 4 : i32
      %95 = vector.broadcast %c4_i32_37 : i32 to vector<1x6xi32>
      %96 = arith.cmpi eq, %22, %95 : vector<1x6xi32>
      %97 = arith.extui %96 : vector<1x6xi1> to vector<1x6xi32>
      %98 = arith.sitofp %97 : vector<1x6xi32> to vector<1x6xf32>
      %99 = arith.sitofp %94 : vector<2x1xi32> to vector<2x1xf32>
      %100 = vector.broadcast %99 : vector<2x1xf32> to vector<2x6xf32>
      %101 = vector.broadcast %98 : vector<1x6xf32> to vector<2x6xf32>
      %102 = arith.mulf %100, %101 : vector<2x6xf32>
      %103 = arith.maximumf %87, %102 : vector<2x6xf32>
      %c5_i32 = arith.constant 5 : i32
      %104 = vector.broadcast %c5_i32 : i32 to vector<2x8x128xi32>
      %105 = arith.shrsi %21, %104 : vector<2x8x128xi32>
      %c1_i32_38 = arith.constant 1 : i32
      %106 = vector.broadcast %c1_i32_38 : i32 to vector<2x8x128xi32>
      %107 = arith.andi %105, %106 : vector<2x8x128xi32>
      %cst_39 = arith.constant dense<-2147483648> : vector<2x8xi32>
      %108 = vector.multi_reduction <maxsi>, %107, %cst_39 [2] : vector<2x8x128xi32> to vector<2x8xi32>
      %cst_40 = arith.constant dense<-2147483648> : vector<2xi32>
      %109 = vector.multi_reduction <maxsi>, %108, %cst_40 [1] : vector<2x8xi32> to vector<2xi32>
      %110 = vector.shape_cast %109 : vector<2xi32> to vector<2x1xi32>
      %c5_i32_41 = arith.constant 5 : i32
      %111 = vector.broadcast %c5_i32_41 : i32 to vector<1x6xi32>
      %112 = arith.cmpi eq, %22, %111 : vector<1x6xi32>
      %113 = arith.extui %112 : vector<1x6xi1> to vector<1x6xi32>
      %114 = arith.sitofp %113 : vector<1x6xi32> to vector<1x6xf32>
      %115 = arith.sitofp %110 : vector<2x1xi32> to vector<2x1xf32>
      %116 = vector.broadcast %115 : vector<2x1xf32> to vector<2x6xf32>
      %117 = vector.broadcast %114 : vector<1x6xf32> to vector<2x6xf32>
      %118 = arith.mulf %116, %117 : vector<2x6xf32>
      %119 = arith.maximumf %103, %118 : vector<2x6xf32>
      %c0_42 = arith.constant 0 : index
      %c0_43 = arith.constant 0 : index
      %c0_44 = arith.constant 0 : index
      %120 = vector.load %arg3[%c0_42, %c0_43, %c0_44] : memref<1x2x6xf32, #tpu.memory_space<vmem>>, vector<1x2x6xf32>
      %121 = vector.shape_cast %120 : vector<1x2x6xf32> to vector<2x6xf32>
      %122 = vector.shape_cast %119 : vector<2x6xf32> to vector<1x2x6xf32>
      tpu.vector_store %arg3[%c0_42, %c0_43, %c0_44], %122 {strides = array<i32>} : memref<1x2x6xf32, #tpu.memory_space<vmem>>, vector<1x2x6xf32>,
    } else {
    }
    return
  }
  func.func @transform_0(%arg0: i32, %arg1: i32) -> (i32, i32, i32) {
    %c1_i32 = arith.constant 1 : i32
    %0 = arith.muli %arg0, %c1_i32 : i32
    %1 = arith.addi %0, %arg1 : i32
    %c0_i32 = arith.constant 0 : i32
    %c0_i32_0 = arith.constant 0 : i32
    %c0_i32_1 = arith.constant 0 : i32
    return %c0_i32, %1, %c0_i32_0 : i32, i32, i32
  }
  func.func @transform_1(%arg0: i32, %arg1: i32) -> (i32, i32, i32) {
    %c0_i32 = arith.constant 0 : i32
    %c0_i32_0 = arith.constant 0 : i32
    %c0_i32_1 = arith.constant 0 : i32
    return %arg0, %c0_i32, %c0_i32_0 : i32, i32, i32
  }
}

</mosaic_0001>

<llo_original>
// kernel: tpu_custom_call.1
$region0: #{tpu_custom_call.1}
  #allocation0 [shape = 'u32[]', space=smem, size = 0x4, offset = 0x4, fixed_abs, tag = 'smem constant byte address 0x4 - core index']
  #allocation1 [shape = 'u32[144,128]{1,0:T(1,128)}', space=vmem, size = 0x12000, scoped, tag = 'internal scratch']
  #allocation2 [shape = 's32[2,8,128]{2,1,0:T(8,128)}', space=vmem, size = 0x2000, scoped, tag = 'scratch operand']
  %s0 = inlined_call_operand.hbm [shape: s32[2,16,128], index: 0, kind: input, shape index: {}]
  %s1 = inlined_call_operand.hbm [shape: f32[2,2,6], index: 1, kind: output, shape index: {}]
  %s2 = sld [smem:[#allocation0]]
  $region49: #{tpu_custom_call.1} parent=0
    _
  %s4 = ssub.s32 1, %s2
  %s5 = scalar_select 0, %s4, %s2
  $region1: #{tpu_custom_call.1} parent=0
    #allocation3 [shape = 'u8[16384]{0}', space=vmem, size = 0x4000, scoped, tag = 'input window, operand 0']
    #allocation4 [shape = 's32[2]{0}', space=sflag, size = 0x8, scoped, tag = 'scoped memory for tpu_custom_call.1']
    #allocation5 [shape = 's32[2]{0}', space=sflag, size = 0x8, scoped, tag = 'scoped memory for tpu_custom_call.1']
    #allocation6 [shape = 'u8[2048]{0}', space=vmem, size = 0x800, scoped, tag = 'output window, operand 0']
    %6 = vsyncpa [#allocation4], 0
    %s7 = scalar_lea.sflag [#allocation4], 1
    %8 = vsyncpa %s7, 0
    %9 = vsyncpa [#allocation5], 0
    %s10 = scalar_lea.sflag [#allocation5], 1
    %11 = vsyncpa %s10, 0
    loop: start=0, step=1, limit=4
    $region2: #{tpu_custom_call.1} parent=1 // loop_pre_header
      _
    $region3: #{tpu_custom_call.1} parent=1 // loop_header
      %s13 = sphi 0, %s17
      %p14 = scmp.ge.s32.totalorder %s13, 4
      %s20 = sphi 0, %s32
      %s21 = sphi 0, %s28
      %s22 = sphi 0, %s20
      %s23 = sphi 0, %s21
      %s24 = sphi 0, %s22
      %s25 = sphi 0, %s23
      %s37 = sphi 0, %s39
      %s40 = sphi 0, %s37
      %s41 = sphi 0, %s40
      %s57 = sphi 0, %s41
      %s63 = sphi 0, %s65
      %s66 = sphi 0, %s63
      %s67 = sphi 0, %s66
      %s83 = sphi 0, %s67
    $region4: #{tpu_custom_call.1} parent=1 // loop_header_branch
      %16 = sbr.rel (%p14) target = $region8
    $region5: #{tpu_custom_call.1} parent=1 // loop_body
      %s18 = ssub.s32 %s13, 1
      %s19 = ssub.s32 %s13, 2
      %s26 = sadd.s32 1, %s21
      %p27 = scmp.ge.s32.totalorder %s26, 1
      %s28 = scalar_select %p27, 0, %s26
      %s29 = sadd.s32 1, %s20
      %s30 = scalar_select %p27, %s29, %s20
      %p31 = scmp.ge.s32.totalorder %s30, 2
      %s32 = scalar_select %p31, 0, %s30
      %s33 = sadd.s32 %s20, %s21
      %s34 = sadd.s32 %s32, %s28
      %s35 = ssub.s32 %s33, %s34
      %p36 = scmp.eq.s32.totalorder %s35, 0
      %s38 = sadd.s32 %s37, 1
      %s39 = scalar_select %p36, %s37, %s38
      %p42 = pneg %p36
      %p43 = scmp.eq.s32.totalorder %s13, 1
      %p44 = por %p42, %p43
      %p45 = scmp.ne.s32.totalorder %s37, %s40
      %p46 = scmp.eq.s32.totalorder %s13, 0
      %p47 = por %p45, %p46
      %p48 = scmp.ne.s32.totalorder %s37, %s40
      %p49 = scmp.eq.s32.totalorder %s18, 1
      %p50 = por %p48, %p49
      %p51 = scmp.ne.s32.totalorder %s40, %s41
      %p52 = scmp.eq.s32.totalorder %s18, 0
      %p53 = por %p51, %p52
      %p54 = scmp.ne.s32.totalorder %s40, %s41
      %p55 = scmp.eq.s32.totalorder %s19, 1
      %p56 = por %p54, %p55
      %p58 = scmp.ne.s32.totalorder %s41, %s57
      %p59 = scmp.eq.s32.totalorder %s19, 0
      %p60 = por %p58, %p59
      %s61 = ssub.s32 %s20, %s32
      %p62 = scmp.eq.s32.totalorder %s61, 0
      %s64 = sadd.s32 %s63, 1
      %s65 = scalar_select %p62, %s63, %s64
      %p68 = pneg %p62
      %p69 = scmp.eq.s32.totalorder %s13, 1
      %p70 = por %p68, %p69
      %p71 = scmp.ne.s32.totalorder %s63, %s66
      %p72 = scmp.eq.s32.totalorder %s13, 0
      %p73 = por %p71, %p72
      %p74 = scmp.ne.s32.totalorder %s63, %s66
      %p75 = scmp.eq.s32.totalorder %s18, 1
      %p76 = por %p74, %p75
      %p77 = scmp.ne.s32.totalorder %s66, %s67
      %p78 = scmp.eq.s32.totalorder %s18, 0
      %p79 = por %p77, %p78
      %p80 = scmp.ne.s32.totalorder %s66, %s67
      %p81 = scmp.eq.s32.totalorder %s19, 1
      %p82 = por %p80, %p81
      %p84 = scmp.ne.s32.totalorder %s67, %s83
      %p85 = scmp.eq.s32.totalorder %s19, 0
      %p86 = por %p84, %p85
      %p87 = scmp.le.s32.totalorder 1, %s13
      %p88 = scmp.lt.s32.totalorder %s13, 3
      %p89 = pnand %p87, %p88
      %p90 = pneg %p89
      // Predicated region
      $region9: #{tpu_custom_call.1} parent=5 // pred_check
        _
      $region10: #{tpu_custom_call.1} parent=5 // pred_check_branch
        %92 = sbr.rel (%p89) target = $region12
      $region11: #{tpu_custom_call.1} parent=5 // pred_region
        %s93 = ssub.s32 %s13, 1
      $region12: #{tpu_custom_call.1} parent=5 // pred_fallthru
        _
      %p94 = scmp.lt.s32.totalorder %s13, 2
      // Predicated region
      $region13: #{tpu_custom_call.1} parent=5 // pred_check
        %p95 = pneg %p94
      $region14: #{tpu_custom_call.1} parent=5 // pred_check_branch
        %97 = sbr.rel (%p95) target = $region16
      $region15: #{tpu_custom_call.1} parent=5 // pred_region
        // Predicated region
        $region17: #{tpu_custom_call.1} parent=15 // pred_check
          %p98 = pneg %p47
        $region18: #{tpu_custom_call.1} parent=15 // pred_check_branch
          %100 = sbr.rel (%p98) target = $region20
        $region19: #{tpu_custom_call.1} parent=15 // pred_region
          %s101 = sand.u32 %s37, 1
          %s102 = scalar_lea.sflag [#allocation4], %s101
          %s103 = sand.u32 %s37, 1
          %s104 = smul.addr %s103, 16
          %s105 = scalar_lea.vmem [#allocation3], %s104
          %s106 = sadd.s32 %s20, %s21
          %s108 = ssub.s32 256, 256
          %109 = vsyncadd %s102, %s108
          %s110 = smul.addr %s106, 128
          %s111 = scalar_lea.hbm %s0, %s110
          %s112 = sshll.u32 %s105, 4
          %s113 = int_to_ptr.vmem [resolvable:$true] %s112
          %118 = dma.hbm_to_vmem [thread:$0]  %s111, 256, %s113, %s102, 256, 128, 8
        $region20: #{tpu_custom_call.1} parent=15 // pred_fallthru
          _
      $region16: #{tpu_custom_call.1} parent=5 // pred_fallthru
        _
      %p119 = scmp.le.s32.totalorder 1, %s13
      %p120 = scmp.lt.s32.totalorder %s13, 3
      %p121 = pnand %p119, %p120
      %p122 = pneg %p121
      // Predicated region
      $region21: #{tpu_custom_call.1} parent=5 // pred_check
        _
      $region22: #{tpu_custom_call.1} parent=5 // pred_check_branch
        %124 = sbr.rel (%p121) target = $region24
      $region23: #{tpu_custom_call.1} parent=5 // pred_region
        %s125 = ssub.s32 %s13, 1
        %s126 = sand.u32 %s40, 1
        %s127 = scalar_lea.sflag [#allocation4], %s126
        %s128 = sand.u32 %s40, 1
        %s129 = smul.addr %s128, 16
        %s130 = scalar_lea.vmem [#allocation3], %s129
        // Predicated region
        $region25: #{tpu_custom_call.1} parent=23 // pred_check
          %p131 = pneg %p53
        $region26: #{tpu_custom_call.1} parent=23 // pred_check_branch
          %133 = sbr.rel (%p131) target = $region28
        $region27: #{tpu_custom_call.1} parent=23 // pred_region
          %134 = dma.done %s127, 256
        $region28: #{tpu_custom_call.1} parent=23 // pred_fallthru
          _
        %s135 = sand.u32 %s40, 1
        %s136 = scalar_lea.sflag [#allocation4], %s135
        %s137 = sand.u32 %s40, 1
        %s138 = smul.addr %s137, 16
        %s139 = scalar_lea.vmem [#allocation3], %s138
        %p140 = pneg %p53
        %p141 = pneg %p50
        %p142 = pneg %p79
        %p143 = pneg %p76
        %s144 = sand.u32 %s66, 1
        %s145 = scalar_lea.sflag [#allocation5], %s144
        %s146 = sand.u32 %s66, 1
        %s147 = smul.addr %s146, 2
        %s148 = scalar_lea.vmem [#allocation6], %s147
        %s149 = sadd.s32 %s22, %s23
        %p150 = scmp.eq.s32.totalorder %s23, 0
        // Predicated region
        $region29: #{tpu_custom_call.1} parent=23 // pred_check
          %p151 = pneg %p150
        $region30: #{tpu_custom_call.1} parent=23 // pred_check_branch
          %153 = sbr.rel (%p151) target = $region32
        $region31: #{tpu_custom_call.1} parent=23 // pred_region
          %154 = vst [vmem:[#allocation2] sm:$0xff] 0
          %155 = vst [vmem:[#allocation2 + $0x8] sm:$0xff] 0
        $region32: #{tpu_custom_call.1} parent=23 // pred_fallthru
          _
        %v156 = vld [vmem:[%s130] sm:$0xff]
        %v157 = vld [vmem:[%s130 + $0x8] sm:$0xff]
        %vm158 = vcmp.lt.s32.totalorder %v156, 6
        %vm159 = vcmp.lt.s32.totalorder %v157, 6
        %vm160 = vcmp.ge.s32.totalorder %v156, 0
        %vm161 = vcmp.ge.s32.totalorder %v157, 0
        %vm162 = vmand %vm158, %vm160
        %vm163 = vmand %vm159, %vm161
        %v164 = vand.u32 %v156, 31
        %v165 = vand.u32 %v157, 31
        %v166 = vshll.u32 1, %v164
        %v167 = vshll.u32 1, %v165
        %v168 = vsel %vm162, %v166, 0
        %v169 = vsel %vm163, %v167, 0
        %v170 = vld [vmem:[#allocation2] sm:$0xff]
        %v171 = vld [vmem:[#allocation2 + $0x8] sm:$0xff]
        %v172 = vor.u32 %v170, %v168
        %v173 = vor.u32 %v171, %v169
        %174 = vst [vmem:[#allocation2] sm:$0xff] %v172
        %175 = vst [vmem:[#allocation2 + $0x8] sm:$0xff] %v173
        // Predicated region
        $region33: #{tpu_custom_call.1} parent=23 // pred_check
          %p176 = pneg %p150
        $region34: #{tpu_custom_call.1} parent=23 // pred_check_branch
          %178 = sbr.rel (%p176) target = $region36
        $region35: #{tpu_custom_call.1} parent=23 // pred_region
          %v179 = vld [vmem:[#allocation2] sm:$0xff]
          %v180 = vld [vmem:[#allocation2 + $0x8] sm:$0xff]
          %v181 = vlaneseq
          %v182 = vand.u32 %v181, 127
          %v183 = vand.u32 %v179, 1
          %v184 = vand.u32 %v180, 1
          %v185 = vand.u32 %v183, 65535
          %v186 = vshra.s32 %v183, 16
          %v187 = vcvt.s32.f32 %v185
          %v188 = vcvt.s32.f32 %v186
          %189 = vmax.xlane.f32.xlu0 %v188
          %v190 = vpop.xlane.xlu0 %189
          %vm191 = vcmp.eq.f32.partialorder %v188, %v190
          %v192 = vsel %vm191, %v187, -inf
          %193 = vmax.xlane.f32.xlu0 %v192
          %v194 = vpop.xlane.xlu0 %193
          %v195 = vcvt.f32.s32 %v194
          %v196 = vcvt.f32.s32 %v190
          %v197 = vshll.u32 %v196, 16
          %v198 = vadd.s32 %v197, %v195
          %v199 = vand.u32 %v184, 65535
          %v200 = vshra.s32 %v184, 16
          %v201 = vcvt.s32.f32 %v199
          %v202 = vcvt.s32.f32 %v200
          %203 = vmax.xlane.f32.xlu0 %v202
          %v204 = vpop.xlane.xlu0 %203
          %vm205 = vcmp.eq.f32.partialorder %v202, %v204
          %v206 = vsel %vm205, %v201, -inf
          %207 = vmax.xlane.f32.xlu0 %v206
          %v208 = vpop.xlane.xlu0 %207
          %v209 = vcvt.f32.s32 %v208
          %v210 = vcvt.f32.s32 %v204
          %v211 = vshll.u32 %v210, 16
          %v212 = vadd.s32 %v211, %v209
          %v213 = vlaneseq
          %v214 = vshrl.u32 %v213, 7
          %v215 = vsub.s32 %v182, %v214
          %v216 = vrot.slane %v198, %v215
          %v217 = vlaneseq
          %v218 = vshrl.u32 %v217, 7
          %v219 = vsub.s32 %v182, %v218
          %v220 = vrot.slane %v212, %v219
          %vm221 = vcmask 1041409
          %v222 = vsel %vm221, %v220, %v216
          %vm223 = vcmask 58368
          %v224 = vsel %vm223, %v222, 2147483648
          %v225 = vand.u32 %v224, 65535
          %v226 = vshra.s32 %v224, 16
          %v227 = vcvt.s32.f32 %v225
          %v228 = vcvt.s32.f32 %v226
          %229 = vmax.xlane.f32.xlu0 %v228
          %v230 = vpop.xlane.xlu0 %229
          %vm231 = vcmp.eq.f32.partialorder %v228, %v230
          %v232 = vsel %vm231, %v227, -inf
          %233 = vmax.xlane.f32.xlu0 %v232
          %v234 = vpop.xlane.xlu0 %233
          %v235 = vcvt.f32.s32 %v234
          %v236 = vcvt.f32.s32 %v230
          %v237 = vshll.u32 %v236, 16
          %v238 = vadd.s32 %v237, %v235
          %vm239 = vcmp.eq.s32.totalorder %v182, 0
          %v240 = vsel %vm239, 1, 0
          %v241 = vcvt.s32.f32 %v240
          %v242 = vcvt.s32.f32 %v238
          %v243 = vmul.f32 %v242, %v241
          %v244 = vmax.f32 %v243, 0.0
          %v245 = vshra.s32 %v179, 1
          %v246 = vshra.s32 %v180, 1
          %v247 = vand.u32 %v245, 1
          %v248 = vand.u32 %v246, 1
          %v249 = vand.u32 %v247, 65535
          %v250 = vshra.s32 %v247, 16
          %v251 = vcvt.s32.f32 %v249
          %v252 = vcvt.s32.f32 %v250
          %253 = vmax.xlane.f32.xlu0 %v252
          %v254 = vpop.xlane.xlu0 %253
          %vm255 = vcmp.eq.f32.partialorder %v252, %v254
          %v256 = vsel %vm255, %v251, -inf
          %257 = vmax.xlane.f32.xlu0 %v256
          %v258 = vpop.xlane.xlu0 %257
          %v259 = vcvt.f32.s32 %v258
          %v260 = vcvt.f32.s32 %v254
          %v261 = vshll.u32 %v260, 16
          %v262 = vadd.s32 %v261, %v259
          %v263 = vand.u32 %v248, 65535
          %v264 = vshra.s32 %v248, 16
          %v265 = vcvt.s32.f32 %v263
          %v266 = vcvt.s32.f32 %v264
          %267 = vmax.xlane.f32.xlu0 %v266
          %v268 = vpop.xlane.xlu0 %267
          %vm269 = vcmp.eq.f32.partialorder %v266, %v268
          %v270 = vsel %vm269, %v265, -inf
          %271 = vmax.xlane.f32.xlu0 %v270
          %v272 = vpop.xlane.xlu0 %271
          %v273 = vcvt.f32.s32 %v272
          %v274 = vcvt.f32.s32 %v268
          %v275 = vshll.u32 %v274, 16
          %v276 = vadd.s32 %v275, %v273
          %v277 = vlaneseq
          %v278 = vshrl.u32 %v277, 7
          %v279 = vsub.s32 %v182, %v278
          %v280 = vrot.slane %v262, %v279
          %v281 = vlaneseq
          %v282 = vshrl.u32 %v281, 7
          %v283 = vsub.s32 %v182, %v282
          %v284 = vrot.slane %v276, %v283
          %v285 = vsel %vm221, %v284, %v280
          %v286 = vsel %vm223, %v285, 2147483648
          %v287 = vand.u32 %v286, 65535
          %v288 = vshra.s32 %v286, 16
          %v289 = vcvt.s32.f32 %v287
          %v290 = vcvt.s32.f32 %v288
          %291 = vmax.xlane.f32.xlu0 %v290
          %v292 = vpop.xlane.xlu0 %291
          %vm293 = vcmp.eq.f32.partialorder %v290, %v292
          %v294 = vsel %vm293, %v289, -inf
          %295 = vmax.xlane.f32.xlu0 %v294
          %v296 = vpop.xlane.xlu0 %295
          %v297 = vcvt.f32.s32 %v296
          %v298 = vcvt.f32.s32 %v292
          %v299 = vshll.u32 %v298, 16
          %v300 = vadd.s32 %v299, %v297
          %vm301 = vcmp.eq.s32.totalorder %v182, 1
          %v302 = vsel %vm301, 1, 0
          %v303 = vcvt.s32.f32 %v302
          %v304 = vcvt.s32.f32 %v300
          %v305 = vmul.f32 %v304, %v303
          %v306 = vmax.f32 %v244, %v305
          %v307 = vshra.s32 %v179, 2
          %v308 = vshra.s32 %v180, 2
          %v309 = vand.u32 %v307, 1
          %v310 = vand.u32 %v308, 1
          %v311 = vand.u32 %v309, 65535
          %v312 = vshra.s32 %v309, 16
          %v313 = vcvt.s32.f32 %v311
          %v314 = vcvt.s32.f32 %v312
          %315 = vmax.xlane.f32.xlu0 %v314
          %v316 = vpop.xlane.xlu0 %315
          %vm317 = vcmp.eq.f32.partialorder %v314, %v316
          %v318 = vsel %vm317, %v313, -inf
          %319 = vmax.xlane.f32.xlu0 %v318
          %v320 = vpop.xlane.xlu0 %319
          %v321 = vcvt.f32.s32 %v320
          %v322 = vcvt.f32.s32 %v316
          %v323 = vshll.u32 %v322, 16
          %v324 = vadd.s32 %v323, %v321
          %v325 = vand.u32 %v310, 65535
          %v326 = vshra.s32 %v310, 16
          %v327 = vcvt.s32.f32 %v325
          %v328 = vcvt.s32.f32 %v326
          %329 = vmax.xlane.f32.xlu0 %v328
          %v330 = vpop.xlane.xlu0 %329
          %vm331 = vcmp.eq.f32.partialorder %v328, %v330
          %v332 = vsel %vm331, %v327, -inf
          %333 = vmax.xlane.f32.xlu0 %v332
          %v334 = vpop.xlane.xlu0 %333
          %v335 = vcvt.f32.s32 %v334
          %v336 = vcvt.f32.s32 %v330
          %v337 = vshll.u32 %v336, 16
          %v338 = vadd.s32 %v337, %v335
          %v339 = vlaneseq
          %v340 = vshrl.u32 %v339, 7
          %v341 = vsub.s32 %v182, %v340
          %v342 = vrot.slane %v324, %v341
          %v343 = vlaneseq
          %v344 = vshrl.u32 %v343, 7
          %v345 = vsub.s32 %v182, %v344
          %v346 = vrot.slane %v338, %v345
          %v347 = vsel %vm221, %v346, %v342
          %v348 = vsel %vm223, %v347, 2147483648
          %v349 = vand.u32 %v348, 65535
          %v350 = vshra.s32 %v348, 16
          %v351 = vcvt.s32.f32 %v349
          %v352 = vcvt.s32.f32 %v350
          %353 = vmax.xlane.f32.xlu0 %v352
          %v354 = vpop.xlane.xlu0 %353
          %vm355 = vcmp.eq.f32.partialorder %v352, %v354
          %v356 = vsel %vm355, %v351, -inf
          %357 = vmax.xlane.f32.xlu0 %v356
          %v358 = vpop.xlane.xlu0 %357
          %v359 = vcvt.f32.s32 %v358
          %v360 = vcvt.f32.s32 %v354
          %v361 = vshll.u32 %v360, 16
          %v362 = vadd.s32 %v361, %v359
          %vm363 = vcmp.eq.s32.totalorder %v182, 2
          %v364 = vsel %vm363, 1, 0
          %v365 = vcvt.s32.f32 %v364
          %v366 = vcvt.s32.f32 %v362
          %v367 = vmul.f32 %v366, %v365
          %v368 = vmax.f32 %v306, %v367
          %v369 = vshra.s32 %v179, 3
          %v370 = vshra.s32 %v180, 3
          %v371 = vand.u32 %v369, 1
          %v372 = vand.u32 %v370, 1
          %v373 = vand.u32 %v371, 65535
          %v374 = vshra.s32 %v371, 16
          %v375 = vcvt.s32.f32 %v373
          %v376 = vcvt.s32.f32 %v374
          %377 = vmax.xlane.f32.xlu0 %v376
          %v378 = vpop.xlane.xlu0 %377
          %vm379 = vcmp.eq.f32.partialorder %v376, %v378
          %v380 = vsel %vm379, %v375, -inf
          %381 = vmax.xlane.f32.xlu0 %v380
          %v382 = vpop.xlane.xlu0 %381
          %v383 = vcvt.f32.s32 %v382
          %v384 = vcvt.f32.s32 %v378
          %v385 = vshll.u32 %v384, 16
          %v386 = vadd.s32 %v385, %v383
          %v387 = vand.u32 %v372, 65535
          %v388 = vshra.s32 %v372, 16
          %v389 = vcvt.s32.f32 %v387
          %v390 = vcvt.s32.f32 %v388
          %391 = vmax.xlane.f32.xlu0 %v390
          %v392 = vpop.xlane.xlu0 %391
          %vm393 = vcmp.eq.f32.partialorder %v390, %v392
          %v394 = vsel %vm393, %v389, -inf
          %395 = vmax.xlane.f32.xlu0 %v394
          %v396 = vpop.xlane.xlu0 %395
          %v397 = vcvt.f32.s32 %v396
          %v398 = vcvt.f32.s32 %v392
          %v399 = vshll.u32 %v398, 16
          %v400 = vadd.s32 %v399, %v397
          %v401 = vlaneseq
          %v402 = vshrl.u32 %v401, 7
          %v403 = vsub.s32 %v182, %v402
          %v404 = vrot.slane %v386, %v403
          %v405 = vlaneseq
          %v406 = vshrl.u32 %v405, 7
          %v407 = vsub.s32 %v182, %v406
          %v408 = vrot.slane %v400, %v407
          %v409 = vsel %vm221, %v408, %v404
          %v410 = vsel %vm223, %v409, 2147483648
          %v411 = vand.u32 %v410, 65535
          %v412 = vshra.s32 %v410, 16
          %v413 = vcvt.s32.f32 %v411
          %v414 = vcvt.s32.f32 %v412
          %415 = vmax.xlane.f32.xlu0 %v414
          %v416 = vpop.xlane.xlu0 %415
          %vm417 = vcmp.eq.f32.partialorder %v414, %v416
          %v418 = vsel %vm417, %v413, -inf
          %419 = vmax.xlane.f32.xlu0 %v418
          %v420 = vpop.xlane.xlu0 %419
          %v421 = vcvt.f32.s32 %v420
          %v422 = vcvt.f32.s32 %v416
          %v423 = vshll.u32 %v422, 16
          %v424 = vadd.s32 %v423, %v421
          %vm425 = vcmp.eq.s32.totalorder %v182, 3
          %v426 = vsel %vm425, 1, 0
          %v427 = vcvt.s32.f32 %v426
          %v428 = vcvt.s32.f32 %v424
          %v429 = vmul.f32 %v428, %v427
          %v430 = vmax.f32 %v368, %v429
          %v431 = vshra.s32 %v179, 4
          %v432 = vshra.s32 %v180, 4
          %v433 = vand.u32 %v431, 1
          %v434 = vand.u32 %v432, 1
          %v435 = vand.u32 %v433, 65535
          %v436 = vshra.s32 %v433, 16
          %v437 = vcvt.s32.f32 %v435
          %v438 = vcvt.s32.f32 %v436
          %439 = vmax.xlane.f32.xlu0 %v438
          %v440 = vpop.xlane.xlu0 %439
          %vm441 = vcmp.eq.f32.partialorder %v438, %v440
          %v442 = vsel %vm441, %v437, -inf
          %443 = vmax.xlane.f32.xlu0 %v442
          %v444 = vpop.xlane.xlu0 %443
          %v445 = vcvt.f32.s32 %v444
          %v446 = vcvt.f32.s32 %v440
          %v447 = vshll.u32 %v446, 16
          %v448 = vadd.s32 %v447, %v445
          %v449 = vand.u32 %v434, 65535
          %v450 = vshra.s32 %v434, 16
          %v451 = vcvt.s32.f32 %v449
          %v452 = vcvt.s32.f32 %v450
          %453 = vmax.xlane.f32.xlu0 %v452
          %v454 = vpop.xlane.xlu0 %453
          %vm455 = vcmp.eq.f32.partialorder %v452, %v454
          %v456 = vsel %vm455, %v451, -inf
          %457 = vmax.xlane.f32.xlu0 %v456
          %v458 = vpop.xlane.xlu0 %457
          %v459 = vcvt.f32.s32 %v458
          %v460 = vcvt.f32.s32 %v454
          %v461 = vshll.u32 %v460, 16
          %v462 = vadd.s32 %v461, %v459
          %v463 = vlaneseq
          %v464 = vshrl.u32 %v463, 7
          %v465 = vsub.s32 %v182, %v464
          %v466 = vrot.slane %v448, %v465
          %v467 = vlaneseq
          %v468 = vshrl.u32 %v467, 7
          %v469 = vsub.s32 %v182, %v468
          %v470 = vrot.slane %v462, %v469
          %v471 = vsel %vm221, %v470, %v466
          %v472 = vsel %vm223, %v471, 2147483648
          %v473 = vand.u32 %v472, 65535
          %v474 = vshra.s32 %v472, 16
          %v475 = vcvt.s32.f32 %v473
          %v476 = vcvt.s32.f32 %v474
          %477 = vmax.xlane.f32.xlu0 %v476
          %v478 = vpop.xlane.xlu0 %477
          %vm479 = vcmp.eq.f32.partialorder %v476, %v478
          %v480 = vsel %vm479, %v475, -inf
          %481 = vmax.xlane.f32.xlu0 %v480
          %v482 = vpop.xlane.xlu0 %481
          %v483 = vcvt.f32.s32 %v482
          %v484 = vcvt.f32.s32 %v478
          %v485 = vshll.u32 %v484, 16
          %v486 = vadd.s32 %v485, %v483
          %vm487 = vcmp.eq.s32.totalorder %v182, 4
          %v488 = vsel %vm487, 1, 0
          %v489 = vcvt.s32.f32 %v488
          %v490 = vcvt.s32.f32 %v486
          %v491 = vmul.f32 %v490, %v489
          %v492 = vmax.f32 %v430, %v491
          %v493 = vshra.s32 %v179, 5
          %v494 = vshra.s32 %v180, 5
          %v495 = vand.u32 %v493, 1
          %v496 = vand.u32 %v494, 1
          %v497 = vand.u32 %v495, 65535
          %v498 = vshra.s32 %v495, 16
          %v499 = vcvt.s32.f32 %v497
          %v500 = vcvt.s32.f32 %v498
          %501 = vmax.xlane.f32.xlu0 %v500
          %v502 = vpop.xlane.xlu0 %501
          %vm503 = vcmp.eq.f32.partialorder %v500, %v502
          %v504 = vsel %vm503, %v499, -inf
          %505 = vmax.xlane.f32.xlu0 %v504
          %v506 = vpop.xlane.xlu0 %505
          %v507 = vcvt.f32.s32 %v506
          %v508 = vcvt.f32.s32 %v502
          %v509 = vshll.u32 %v508, 16
          %v510 = vadd.s32 %v509, %v507
          %v511 = vand.u32 %v496, 65535
          %v512 = vshra.s32 %v496, 16
          %v513 = vcvt.s32.f32 %v511
          %v514 = vcvt.s32.f32 %v512
          %515 = vmax.xlane.f32.xlu0 %v514
          %v516 = vpop.xlane.xlu0 %515
          %vm517 = vcmp.eq.f32.partialorder %v514, %v516
          %v518 = vsel %vm517, %v513, -inf
          %519 = vmax.xlane.f32.xlu0 %v518
          %v520 = vpop.xlane.xlu0 %519
          %v521 = vcvt.f32.s32 %v520
          %v522 = vcvt.f32.s32 %v516
          %v523 = vshll.u32 %v522, 16
          %v524 = vadd.s32 %v523, %v521
          %v525 = vlaneseq
          %v526 = vshrl.u32 %v525, 7
          %v527 = vsub.s32 %v182, %v526
          %v528 = vrot.slane %v510, %v527
          %v529 = vlaneseq
          %v530 = vshrl.u32 %v529, 7
          %v531 = vsub.s32 %v182, %v530
          %v532 = vrot.slane %v524, %v531
          %v533 = vsel %vm221, %v532, %v528
          %v534 = vsel %vm223, %v533, 2147483648
          %v535 = vand.u32 %v534, 65535
          %v536 = vshra.s32 %v534, 16
          %v537 = vcvt.s32.f32 %v535
          %v538 = vcvt.s32.f32 %v536
          %539 = vmax.xlane.f32.xlu0 %v538
          %v540 = vpop.xlane.xlu0 %539
          %vm541 = vcmp.eq.f32.partialorder %v538, %v540
          %v542 = vsel %vm541, %v537, -inf
          %543 = vmax.xlane.f32.xlu0 %v542
          %v544 = vpop.xlane.xlu0 %543
          %v545 = vcvt.f32.s32 %v544
          %v546 = vcvt.f32.s32 %v540
          %v547 = vshll.u32 %v546, 16
          %v548 = vadd.s32 %v547, %v545
          %vm549 = vcmp.eq.s32.totalorder %v182, 5
          %v550 = vsel %vm549, 1, 0
          %v551 = vcvt.s32.f32 %v550
          %v552 = vcvt.s32.f32 %v548
          %v553 = vmul.f32 %v552, %v551
          %v554 = vmax.f32 %v492, %v553
          %vm555 = vcmask 41984
          %556 = vst.msk [vmem:[%s148] sm:$0x3] %vm555, %v554
        $region36: #{tpu_custom_call.1} parent=23 // pred_fallthru
          _
        %s557 = sand.u32 %s66, 1
        %s558 = scalar_lea.sflag [#allocation5], %s557
        %s559 = sand.u32 %s66, 1
        %s560 = smul.addr %s559, 2
        %s561 = scalar_lea.vmem [#allocation6], %s560
        // Predicated region
        $region37: #{tpu_custom_call.1} parent=23 // pred_check
          %p562 = pneg %p76
        $region38: #{tpu_custom_call.1} parent=23 // pred_check_branch
          %564 = sbr.rel (%p562) target = $region40
        $region39: #{tpu_custom_call.1} parent=23 // pred_region
          %s566 = ssub.s32 32, 32
          %567 = vsyncadd %s558, %s566
          %s568 = smul.addr %s22, 32
          %s569 = scalar_lea.hbm %s1, %s568
          %s571 = sshll.u32 %s561, 4
          %s572 = int_to_ptr.vmem [resolvable:$true] %s571
          %574 = dma.vmem_to_hbm [thread:$0]  %s572, 32, %s569, %s558
        $region40: #{tpu_custom_call.1} parent=23 // pred_fallthru
          _
      $region24: #{tpu_custom_call.1} parent=5 // pred_fallthru
        _
      %p575 = scmp.le.s32.totalorder 2, %s13
      // Predicated region
      $region41: #{tpu_custom_call.1} parent=5 // pred_check
        %p576 = pneg %p575
      $region42: #{tpu_custom_call.1} parent=5 // pred_check_branch
        %578 = sbr.rel (%p576) target = $region44
      $region43: #{tpu_custom_call.1} parent=5 // pred_region
        %s579 = ssub.s32 %s13, 2
        // Predicated region
        $region45: #{tpu_custom_call.1} parent=43 // pred_check
          %p580 = pneg %p82
        $region46: #{tpu_custom_call.1} parent=43 // pred_check_branch
          %582 = sbr.rel (%p580) target = $region48
        $region47: #{tpu_custom_call.1} parent=43 // pred_region
          %s583 = sand.u32 %s67, 1
          %s584 = scalar_lea.sflag [#allocation5], %s583
          %s585 = sand.u32 %s67, 1
          %s586 = smul.addr %s585, 2
          %s587 = scalar_lea.vmem [#allocation6], %s586
          %588 = dma.done %s584, 32
        $region48: #{tpu_custom_call.1} parent=43 // pred_fallthru
          _
      $region44: #{tpu_custom_call.1} parent=5 // pred_fallthru
        _
    $region6: #{tpu_custom_call.1} parent=1 // loop_footer
      %s17 = sadd.s32 1, %s13
    $region7: #{tpu_custom_call.1} parent=1 // loop_footer_branch
      %12 = sbr.rel target = $region3
    $region8: #{tpu_custom_call.1} parent=1 // loop_exit
      _
    %589 = vsyncpa [#allocation4], 1
    %s590 = scalar_lea.sflag [#allocation4], 1
    %591 = vsyncpa %s590, 1
    %592 = vsyncpa [#allocation5], 1
    %s593 = scalar_lea.sflag [#allocation5], 1
    %594 = vsyncpa %s593, 1

</llo_original>
